<compile_context>
chip_gen: v6e
topology: v6e:2x2x1
jax: 0.10.0
libtpu: 0.0.40
codegen_flags: <defaults>
</compile_context>

<pallas_src>
import jax
import jax.numpy as jnp
from jax.experimental import pallas as pl
from jax.experimental.pallas import tpu as pltpu

_LANE = 128  # TPU vreg lane width; output last dim is padded to a multiple.


def _linear_kernel(x_ref, wt_ref, b_ref, o_ref):
    # x_ref : (B, IN)        VMEM
    # wt_ref: (IN, OUT_pad)  VMEM  (pre-transposed, lane-padded, persistent)
    # b_ref : (1, OUT_pad)   VMEM  (lane-padded, persistent)
    # o_ref : (B, OUT_pad)   VMEM  (lane-dense -> unmasked stores)
    acc = jnp.dot(x_ref[...], wt_ref[...], preferred_element_type=jnp.float32)
    o_ref[...] = (acc + b_ref[...]).astype(o_ref.dtype)


def make_liner_model_forward(weight, bias):
    """One-time setup for LinerModel.forward.

    weight : (out_features, in_features)  -- PyTorch nn.Linear convention
    bias   : (out_features,)

    Returns forward(data) equivalent to the PyTorch module's forward.
    The transpose and lane padding of the (persistent) parameters happen here,
    once, instead of on every call.
    """
    OUT, IN = weight.shape
    OUT_pad = max(_LANE, ((OUT + _LANE - 1) // _LANE) * _LANE)

    wt_pad = jnp.zeros((IN, OUT_pad), jnp.float32)
    wt_pad = wt_pad.at[:, :OUT].set(jnp.asarray(weight, jnp.float32).T)
    b_pad = jnp.zeros((1, OUT_pad), jnpp := jnp.float32) if False else \
        jnp.zeros((1, OUT_pad), jnp.float32).at[:, :OUT].set(
            jnp.asarray(bias, jnp.float32))

    def forward(data):
        x = jnp.asarray(data, dtype=jnp.float32)
        x = jnp.squeeze(x)                       # matches t.squeeze(data)
        squeeze_out = x.ndim == 1                # single sample -> (1, IN)
        x2d = x[None, :] if squeeze_out else x
        B = x2d.shape[0]

        cost = pl.CostEstimate(
            flops=2 * B * IN * OUT_pad,
            transcendentals=0,
            bytes_accessed=4 * (B * IN + IN * OUT_pad + OUT_pad + B * OUT_pad),
        )

        out_pad = pl.pallas_call(
            _linear_kernel,
            out_shape=jax.ShapeDtypeStruct((B, OUT_pad), jnp.float32),
            in_specs=[
                pl.BlockSpec(memory_space=pltpu.VMEM),
                pl.BlockSpec(memory_space=pltpu.VMEM),
                pl.BlockSpec(memory_space=pltpu.VMEM),
            ],
            out_specs=pl.BlockSpec(memory_space=pltpu.VMEM),
            cost_estimate=cost,
        )(x2d, wt_pad, b_pad)

        out = out_pad[:, :OUT]                   # drop lane padding (fused by XLA)
        return out[0] if squeeze_out else out

    return jax.jit(forward)


def liner_model_forward(data, weight, bias):
    """Convenience one-shot wrapper (setup + call)."""
    return make_liner_model_forward(weight, bias)(data)


if __name__ == "__main__":
    # LinerModel(input=32, output=8)
    IN_FEATURES = 32
    OUT_FEATURES = 8
    BATCH = 2

    key = jax.random.PRNGKey(0)
    k_x, k_w, k_b = jax.random.split(key, 3)

    # Input with a size-1 dim so the squeeze in forward() matters: (2, 1, 32) -> (2, 32)
    x = jax.random.normal(k_x, (BATCH, 1, IN_FEATURES), dtype=jnp.float32)

    # Deterministic PyTorch-style init: U(-1/sqrt(in), 1/sqrt(in))
    bound = 1.0 / (IN_FEATURES ** 0.5)
    weight = jax.random.uniform(k_w, (OUT_FEATURES, IN_FEATURES),
                                minval=-bound, maxval=bound, dtype=jnp.float32)
    bias = jax.random.uniform(k_b, (OUT_FEATURES,),
                              minval=-bound, maxval=bound, dtype=jnp.float32)

    forward = make_liner_model_forward(weight, bias)
    out = forward(x)
    jax.block_until_ready(out)

    # Cross-check against a plain-JAX reference.
    ref = jnp.squeeze(x) @ weight.T + bias
    assert out.shape == (BATCH, OUT_FEATURES)
    assert jnp.allclose(out, ref, atol=1e-5, rtol=1e-5)

    # Also exercise the squeeze-to-1D path (batch of 1).
    x1 = jax.random.normal(k_x, (1, IN_FEATURES), dtype=jnp.float32)
    out1 = forward(x1)
    jax.block_until_ready(out1)
    ref1 = jnp.squeeze(x1) @ weight.T + bias
    assert out1.shape == (OUT_FEATURES,)
    assert jnp.allclose(out1, ref1, atol=1e-5, rtol=1e-5)

    print("KERNEL_OK")
</pallas_src>

<mosaic_0001>
module attributes {stable_mosaic.version = 11 : i64} {
  func.func @_linear_kernel(%arg0: memref<2x32xf32, #tpu.memory_space<vmem>>, %arg1: memref<32x128xf32, #tpu.memory_space<vmem>>, %arg2: memref<1x128xf32, #tpu.memory_space<vmem>>, %arg3: memref<2x128xf32, #tpu.memory_space<vmem>>) attributes {dimension_semantics = [], scalar_prefetch = 0 : i64, scratch_operands = 0 : i64, tpu.core_type = #tpu.core_type<tc>} {
    %c0 = arith.constant 0 : index
    %c0_0 = arith.constant 0 : index
    %0 = vector.load %arg0[%c0, %c0_0] : memref<2x32xf32, #tpu.memory_space<vmem>>, vector<2x32xf32>
    %c0_1 = arith.constant 0 : index
    %c0_2 = arith.constant 0 : index
    %1 = vector.load %arg1[%c0_1, %c0_2] : memref<32x128xf32, #tpu.memory_space<vmem>>, vector<32x128xf32>
    %cst = arith.constant dense<0.000000e+00> : vector<2x128xf32>
    %2 = tpu.matmul %0, %1, %cst {dimension_numbers = #tpu.dot_dimension_numbers<[1], [0], [0], [1], [0, 0, 1, 1], [], []>} : vector<2x32xf32>, vector<32x128xf32>, vector<2x128xf32> -> vector<2x128xf32>
    %c0_3 = arith.constant 0 : index
    %c0_4 = arith.constant 0 : index
    %3 = vector.load %arg2[%c0_3, %c0_4] : memref<1x128xf32, #tpu.memory_space<vmem>>, vector<1x128xf32>
    %4 = vector.broadcast %3 : vector<1x128xf32> to vector<2x128xf32>
    %5 = arith.addf %2, %4 : vector<2x128xf32>
    %c0_5 = arith.constant 0 : index
    %c0_6 = arith.constant 0 : index
    %6 = vector.load %arg3[%c0_5, %c0_6] : memref<2x128xf32, #tpu.memory_space<vmem>>, vector<2x128xf32>
    tpu.vector_store %arg3[%c0_5, %c0_6], %5 {strides = array<i32>} : memref<2x128xf32, #tpu.memory_space<vmem>>, vector<2x128xf32>,
    return
  }
}

</mosaic_0001>

<llo_original>
// kernel: forward.1
$region0: #{forward.1}
  #allocation0 [shape = 'u32[]', space=smem, size = 0x4, offset = 0x4, fixed_abs, tag = 'smem constant byte address 0x4 - core index']
  #allocation1 [shape = 'u32[144,128]{1,0:T(1,128)}', space=vmem, size = 0x12000, scoped, tag = 'internal scratch']
  %s0 = inlined_call_operand.hbm [shape: f32[2,32], index: 0, kind: input, shape index: {}]
  %s1 = inlined_call_operand.hbm [shape: f32[32,128], index: 1, kind: input, shape index: {}]
  %s2 = inlined_call_operand.vmem [shape: f32[1,128], index: 2, kind: input, shape index: {}]
  %s3 = inlined_call_operand.hbm [shape: f32[2,128], index: 3, kind: output, shape index: {}]
  %s4 = sld [smem:[#allocation0]]
  $region30: #{forward.1} parent=0
    _
  %s6 = ssub.s32 1, %s4
  %s7 = scalar_select 0, %s6, %s4
  $region1: #{forward.1} parent=0
    #allocation2 [shape = 'u8[1024]{0}', space=vmem, size = 0x400, scoped, tag = 'input window, operand 0, single buffered']
    #allocation3 [shape = 's32[1]{0}', space=sflag, size = 0x4, scoped, tag = 'scoped memory for forward.1']
    #allocation4 [shape = 's32[1]{0}', space=sflag, size = 0x4, scoped, tag = 'scoped memory for forward.1']
    #allocation5 [shape = 'u8[16384]{0}', space=vmem, size = 0x4000, scoped, tag = 'input window, operand 1, single buffered']
    #allocation6 [shape = 's32[1]{0}', space=sflag, size = 0x4, scoped, tag = 'scoped memory for forward.1']
    #allocation7 [shape = 'u8[1024]{0}', space=vmem, size = 0x400, scoped, tag = 'output window, operand 0, single buffered']
    %8 = vsyncpa [#allocation3], 0
    %9 = vsyncpa [#allocation6], 0
    %10 = vsyncpa [#allocation4], 0
    // Predicated region
    $region2: #{forward.1} parent=1 // pred_check
      _
    $region3: #{forward.1} parent=1 // pred_check_branch
      %12 = sbr.rel (0) target = $region5
    $region4: #{forward.1} parent=1 // pred_region
      %s14 = ssub.s32 32, 32
      %15 = vsyncadd [#allocation3], %s14
      %s17 = sshll.u32 [#allocation2], 4
      %s18 = int_to_ptr.vmem [resolvable:$true] %s17
      %20 = dma.hbm_to_vmem [thread:$0]  %s0, 32, %s18, [#allocation3]
    $region5: #{forward.1} parent=1 // pred_fallthru
      _
    // Predicated region
    $region6: #{forward.1} parent=1 // pred_check
      _
    $region7: #{forward.1} parent=1 // pred_check_branch
      %22 = sbr.rel (0) target = $region9
    $region8: #{forward.1} parent=1 // pred_region
      %s24 = ssub.s32 512, 512
      %25 = vsyncadd [#allocation6], %s24
      %s26 = sshll.u32 [#allocation5], 4
      %s27 = int_to_ptr.vmem [resolvable:$true] %s26
      %32 = dma.hbm_to_vmem [thread:$0]  %s1, 512, %s27, [#allocation6], 128, 128, 8
    $region9: #{forward.1} parent=1 // pred_fallthru
      _
    // Predicated region
    $region10: #{forward.1} parent=1 // pred_check
      _
    $region11: #{forward.1} parent=1 // pred_check_branch
      %34 = sbr.rel (0) target = $region13
    $region12: #{forward.1} parent=1 // pred_region
      _
    $region13: #{forward.1} parent=1 // pred_fallthru
      _
    // Predicated region
    $region14: #{forward.1} parent=1 // pred_check
      _
    $region15: #{forward.1} parent=1 // pred_check_branch
      %36 = sbr.rel (0) target = $region17
    $region16: #{forward.1} parent=1 // pred_region
      %37 = dma.done [#allocation3], 32
    $region17: #{forward.1} parent=1 // pred_fallthru
      _
    // Predicated region
    $region18: #{forward.1} parent=1 // pred_check
      _
    $region19: #{forward.1} parent=1 // pred_check_branch
      %39 = sbr.rel (0) target = $region21
    $region20: #{forward.1} parent=1 // pred_region
      %40 = dma.done [#allocation6], 512
    $region21: #{forward.1} parent=1 // pred_fallthru
      _
    %v41 = vld [vmem:[#allocation2] sm:$0x3]
    %v42 = vld [vmem:[#allocation5] sm:$0xff]
    %v43 = vld [vmem:[#allocation5 + $0x8] sm:$0xff]
    %v44 = vld [vmem:[#allocation5 + $0x10] sm:$0xff]
    %v45 = vld [vmem:[#allocation5 + $0x18] sm:$0xff]
    %v46 = vld [vmem:[%s2] sm:$0x1]
    %v48 = vlaneseq
    %v49 = vshrl.u32 %v48, 7
    %v50 = vsub.s32 0, %v49
    %v51 = vrot.slane %v46, %v50
    %vm53 = vcmask 261120
    %v55 = vsel %vm53, %v41, 0
    %57 = vmatprep.subr.mxu0 0.0
    %58 = vmatpush1.msra.mxu0 0.0
    %59 = vmatprep.subr.mxu0 0.0
    %60 = vmatpush1.msra.mxu0 0.0
    %61 = vmatprep.subr.mxu0 0.0
    %62 = vmatpush1.msra.mxu0 0.0
    %63 = vmatprep.subr.mxu0 0.0
    %64 = vmatpush1.msra.mxu0 0.0
    %65 = vmatprep.subr.mxu0 0.0
    %66 = vmatpush1.msra.mxu0 0.0
    %67 = vmatprep.subr.mxu0 0.0
    %68 = vmatpush1.msra.mxu0 0.0
    %69 = vmatprep.subr.mxu0 0.0
    %70 = vmatpush1.msra.mxu0 0.0
    %71 = vmatprep.subr.mxu0 0.0
    %72 = vmatpush1.msra.mxu0 0.0
    %73 = vmatprep.subr.mxu0 0.0
    %74 = vmatpush1.msra.mxu0 0.0
    %75 = vmatprep.subr.mxu0 0.0
    %76 = vmatpush1.msra.mxu0 0.0
    %77 = vmatprep.subr.mxu0 0.0
    %78 = vmatpush1.msra.mxu0 0.0
    %79 = vmatprep.subr.mxu0 0.0
    %80 = vmatpush1.msra.mxu0 0.0
    %81 = vmatprep.subr.mxu0 0.0
    %82 = vmatpush1.msra.mxu0 %v45
    %83 = vmatprep.subr.mxu0 0.0
    %84 = vmatpush1.msra.mxu0 %v44
    %85 = vmatprep.subr.mxu0 0.0
    %86 = vmatpush1.msra.mxu0 %v43
    %87 = vmatprep.subr.mxu0 0.0
    %88 = vmatpush1.msra.mxu0 %v42
    %89 = vmatprep.subr.mxu0 0.0
    %90 = vmatpush2.msra.mxu0 0.0
    %91 = vmatprep.subr.mxu0 0.0
    %92 = vmatpush2.msra.mxu0 0.0
    %93 = vmatprep.subr.mxu0 0.0
    %94 = vmatpush2.msra.mxu0 0.0
    %95 = vmatprep.subr.mxu0 0.0
    %96 = vmatpush2.msra.mxu0 0.0
    %97 = vmatprep.subr.mxu0 0.0
    %98 = vmatpush2.msra.mxu0 0.0
    %99 = vmatprep.subr.mxu0 0.0
    %100 = vmatpush2.msra.mxu0 0.0
    %101 = vmatprep.subr.mxu0 0.0
    %102 = vmatpush2.msra.mxu0 0.0
    %103 = vmatprep.subr.mxu0 0.0
    %104 = vmatpush2.msra.mxu0 0.0
    %105 = vmatprep.subr.mxu0 0.0
    %106 = vmatpush2.msra.mxu0 0.0
    %107 = vmatprep.subr.mxu0 0.0
    %108 = vmatpush2.msra.mxu0 0.0
    %109 = vmatprep.subr.mxu0 0.0
    %110 = vmatpush2.msra.mxu0 0.0
    %111 = vmatprep.subr.mxu0 0.0
    %112 = vmatpush2.msra.mxu0 0.0
    %113 = vmatprep.subr.mxu0 0.0
    %114 = vmatpush2.msra.mxu0 0.0
    %115 = vmatprep.subr.mxu0 0.0
    %116 = vmatpush2.msra.mxu0 0.0
    %117 = vmatprep.subr.mxu0 0.0
    %118 = vmatpush2.msra.mxu0 0.0
    %119 = vmatprep.subr.mxu0 0.0
    %120 = vmatpush2.msra.mxu0 0.0
    %121 = vmatprep.mubr.f32.mxu0 0.0
    %122 = vmatmul.mubr.f32.gmra.mxu0 %v55
    %v123 = vpop.f32.mrf.mxu0
    %v124 = vadd.f32 %v51, %v123
    %v125 = vpop.f32.mrf.mxu0
    %126 = vdwg.mxu0
    %127 = vst [vmem:[#allocation7] sm:$0x3] %v124
    // Predicated region
    $region22: #{forward.1} parent=1 // pred_check
      _
    $region23: #{forward.1} parent=1 // pred_check_branch
      %129 = sbr.rel (0) target = $region25
    $region24: #{forward.1} parent=1 // pred_region
      %s131 = ssub.s32 32, 32
      %132 = vsyncadd [#allocation4], %s131
      %s134 = sshll.u32 [#allocation7], 4
      %s135 = int_to_ptr.vmem [resolvable:$true] %s134
      %137 = dma.vmem_to_hbm [thread:$0]  %s135, 32, %s3, [#allocation4]
    $region25: #{forward.1} parent=1 // pred_fallthru
      _
    // Predicated region
    $region26: #{forward.1} parent=1 // pred_check
      _
    $region27: #{forward.1} parent=1 // pred_check_branch
      %139 = sbr.rel (0) target = $region29
    $region28: #{forward.1} parent=1 // pred_region
      %140 = dma.done [#allocation4], 32
    $region29: #{forward.1} parent=1 // pred_fallthru
      _
    %141 = vsyncpa [#allocation3], 1
    %142 = vsyncpa [#allocation6], 1
    %143 = vsyncpa [#allocation4], 1

</llo_original>
